<compile_context>
chip_gen: v7x
topology: tpu7x:2x2x1
jax: 0.10.0
libtpu: 0.0.40
codegen_flags: <defaults>
</compile_context>

<pallas_src>
from functools import partial

import jax
import jax.numpy as jnp
from jax import lax
from jax.experimental import pallas as pl
from jax.experimental.pallas import tpu as pltpu


def _decomp_kernel(x_ref, res_ref, mean_ref, *, kernel_size, pad):
    # x_ref / res_ref / mean_ref: (bt, L, tc) blocks.
    bt, L, tc = x_ref.shape
    x = x_ref[...]                       # native dtype (taps stay packed)
    x_f32 = x.astype(jnp.float32)

    # Edge rows broadcast along time; hoisted once, reused by every tap fixup.
    x_first = jnp.broadcast_to(x[:, 0:1, :], (bt, L, tc))
    x_last = jnp.broadcast_to(x[:, L - 1:L, :], (bt, L, tc))
    t_idx = lax.broadcasted_iota(jnp.int32, (bt, L, tc), 1)

    # k-tap window sum with edge replication.  Center tap (d == 0) is x itself;
    # the other taps are cyclic sublane rolls (XLU) with a jnp.where fixup for
    # the rows that fell off the front/back edge.  Two partial f32 accumulators
    # shorten the serial VPU add chain.
    acc = [x_f32, jnp.zeros_like(x_f32)]
    n = 0
    for d in range(-pad, pad + 1):
        if d == 0:
            continue
        rolled = pltpu.roll(x, shift=(-d) % L, axis=1)   # rolled[t] = x[(t+d) mod L]
        if d > 0:
            tap = jnp.where(t_idx >= L - d, x_last, rolled)
        else:
            tap = jnp.where(t_idx < -d, x_first, rolled)
        acc[n & 1] = acc[n & 1] + tap.astype(jnp.float32)
        n += 1
    # TODO(synk): for kernel_size >= ~16 on v7x, switch the unrolled tap sum to
    # a running/prefix sum (or banded MXU matmul) to keep the kernel HBM-bound.

    mean = (acc[0] + acc[1]) * jnp.float32(1.0 / kernel_size)
    mean_ref[...] = mean.astype(mean_ref.dtype)
    res_ref[...] = (x_f32 - mean).astype(res_ref.dtype)


def series_decomp(x, kernel_size, *, channel_tile=None, batch_tile=None):
    """Equivalent of the PyTorch series_decomp.forward. Returns (res, moving_mean)."""
    assert kernel_size % 2 == 1, (
        "series_decomp requires odd kernel_size so res = x - mean is shape-valid")
    B, L, C = x.shape
    pad = (kernel_size - 1) // 2
    itemsize = jnp.dtype(x.dtype).itemsize

    # Generation-aware VMEM budget (v7x: 64 MiB, v5e/v6e: 128 MiB per core).
    try:
        vmem_cap = int(pltpu.get_tpu_info().vmem_capacity_bytes)
    except Exception:  # pragma: no cover - conservative fallback off-TPU
        vmem_cap = 64 * 1024 * 1024
    budget = (vmem_cap * 3) // 4

    def live_bytes(bt, tc):
        # Double-buffered input + two double-buffered outputs (no scratch),
        # plus in-kernel f32 temporaries (x_f32, edge bcasts, iota, rolled tap,
        # two accumulators) that stay live in VMEM.
        io = (2 + 2 * 2) * bt * L * tc * itemsize
        tmp = 6 * bt * L * tc * 4
        return io + tmp

    # --- channel tile: lane-dense multiple of 128 dividing C, else full C ---
    if channel_tile is not None:
        tc = channel_tile
        assert C % tc == 0, "channel_tile must divide C"
        assert tc == C or tc % 128 == 0, (
            "channel_tile must be a multiple of 128 (or the full channel dim) "
            "to satisfy the (8,128) BlockSpec rule")
    elif C % 128 == 0:
        candidates = [t for t in range(128, C + 1, 128) if C % t == 0]
        fitting = [t for t in candidates if live_bytes(1, t) <= budget]
        tc = max(fitting) if fitting else min(candidates)
    else:
        # Full-C block is always legal, but the two output stores are masked
        # (vst.msk) partial stores when C is not a multiple of 128.
        # TODO(synk): real model channel counts (~7..862) should either feed an
        # NCL (B, C, L) time-last layout path or pad C to a multiple of 128
        # upstream; lane-dense stores are ~4.5x cheaper and 2/3 of this
        # kernel's HBM bytes are stores.
        tc = C
    n_ct = C // tc
    # TODO(synk): if live_bytes(1, tc) still exceeds the budget (very long L
    # with unaligned C), add an L-tiled path with a 2*pad halo via manual DMA.

    # --- batch packing: amortize per-grid-step overhead, keep >=2 grid steps ---
    pack_cap = min(budget // 3, 16 * 1024 * 1024)
    if batch_tile is not None:
        bt = batch_tile
        assert B % bt == 0
    else:
        bt = 1
        while (bt < B and B % (2 * bt) == 0
               and live_bytes(2 * bt, tc) <= pack_cap
               and (B // (2 * bt)) * n_ct >= 2):
            bt *= 2
    grid = (B // bt, n_ct)

    need = live_bytes(bt, tc)
    vmem_limit = int(min(max(need + 4 * 1024 * 1024, 32 * 1024 * 1024), vmem_cap))

    kern = partial(_decomp_kernel, kernel_size=kernel_size, pad=pad)
    res, mean = pl.pallas_call(
        kern,
        out_shape=(
            jax.ShapeDtypeStruct((B, L, C), x.dtype),
            jax.ShapeDtypeStruct((B, L, C), x.dtype),
        ),
        grid=grid,
        in_specs=[pl.BlockSpec((bt, L, tc), lambda b, c: (b, 0, c))],
        out_specs=(
            pl.BlockSpec((bt, L, tc), lambda b, c: (b, 0, c)),
            pl.BlockSpec((bt, L, tc), lambda b, c: (b, 0, c)),
        ),
        compiler_params=pltpu.CompilerParams(
            dimension_semantics=("parallel", "parallel"),
            vmem_limit_bytes=vmem_limit,
        ),
    )(x)
    return res, mean


def _reference(x, kernel_size):
    """Pure-JAX reference mirroring the PyTorch code path."""
    pad = (kernel_size - 1) // 2
    xpad = jnp.concatenate(
        [jnp.repeat(x[:, :1, :], pad, axis=1), x, jnp.repeat(x[:, -1:, :], pad, axis=1)],
        axis=1,
    )
    L = x.shape[1]
    windows = jnp.stack([xpad[:, j:j + L, :] for j in range(kernel_size)], axis=0)
    mean = jnp.mean(windows, axis=0)
    return x - mean, mean


if __name__ == "__main__":
    key = jax.random.PRNGKey(0)

    # Primary test: shapes consistent with the module (lane-aligned channels).
    B, L, C = 2, 16, 128
    kernel_size = 5
    x = jax.random.normal(key, (B, L, C), dtype=jnp.float32)
    res, mean = series_decomp(x, kernel_size)
    jax.block_until_ready((res, mean))
    res_ref, mean_ref = _reference(x, kernel_size)
    assert jnp.allclose(res, res_ref, atol=1e-5, rtol=1e-5)
    assert jnp.allclose(mean, mean_ref, atol=1e-5, rtol=1e-5)

    # Second test: large (Autoformer-style) kernel_size and multiple channel
    # tiles, exercising the multi-tile grid + many-tap roll path.
    x2 = jax.random.normal(jax.random.PRNGKey(1), (2, 32, 256), dtype=jnp.float32)
    res2, mean2 = series_decomp(x2, 25, channel_tile=128)
    jax.block_until_ready((res2, mean2))
    res2_ref, mean2_ref = _reference(x2, 25)
    assert jnp.allclose(res2, res2_ref, atol=1e-5, rtol=1e-5)
    assert jnp.allclose(mean2, mean2_ref, atol=1e-5, rtol=1e-5)

    print("KERNEL_OK")
</pallas_src>

<mosaic_0001>
module attributes {stable_mosaic.version = 11 : i64} {
  func.func @_decomp_kernel(%arg0: i32, %arg1: i32, %arg2: memref<1x16x128xf32, #tpu.memory_space<vmem>>, %arg3: memref<1x16x128xf32, #tpu.memory_space<vmem>>, %arg4: memref<1x16x128xf32, #tpu.memory_space<vmem>>) attributes {dimension_semantics = [#tpu.dimension_semantics<parallel>, #tpu.dimension_semantics<parallel>], iteration_bounds = array<i64: 2, 1>, scalar_prefetch = 0 : i64, scratch_operands = 0 : i64, tpu.core_type = #tpu.core_type<tc>, window_params = [{transform_indices = @transform_0, window_bounds = array<i64: 1, 16, 128>}, {transform_indices = @transform_1, window_bounds = array<i64: 1, 16, 128>}, {transform_indices = @transform_2, window_bounds = array<i64: 1, 16, 128>}]} {
    %c0 = arith.constant 0 : index
    %c0_0 = arith.constant 0 : index
    %c0_1 = arith.constant 0 : index
    %0 = vector.load %arg2[%c0, %c0_0, %c0_1] : memref<1x16x128xf32, #tpu.memory_space<vmem>>, vector<1x16x128xf32>
    %1 = vector.extract_strided_slice %0 {offsets = [0, 0, 0], sizes = [1, 1, 128], strides = [1, 1, 1]} : vector<1x16x128xf32> to vector<1x1x128xf32>
    %2 = vector.shape_cast %1 : vector<1x1x128xf32> to vector<1x1x128xf32>
    %3 = vector.broadcast %2 : vector<1x1x128xf32> to vector<1x16x128xf32>
    %4 = vector.extract_strided_slice %0 {offsets = [0, 15, 0], sizes = [1, 1, 128], strides = [1, 1, 1]} : vector<1x16x128xf32> to vector<1x1x128xf32>
    %5 = vector.shape_cast %4 : vector<1x1x128xf32> to vector<1x1x128xf32>
    %6 = vector.broadcast %5 : vector<1x1x128xf32> to vector<1x16x128xf32>
    %7 = tpu.iota {dimensions = array<i32: 1>} : vector<1x16x128xi32>
    %cst = arith.constant 0.000000e+00 : f32
    %8 = vector.broadcast %cst : f32 to vector<1x16x128xf32>
    %c2_i32 = arith.constant 2 : i32
    %9 = tpu.dynamic_rotate %0 by %c2_i32 dim 1 : vector<1x16x128xf32>, i32 -> vector<1x16x128xf32>
    %c2_i32_2 = arith.constant 2 : i32
    %10 = vector.broadcast %c2_i32_2 : i32 to vector<1x16x128xi32>
    %11 = arith.cmpi slt, %7, %10 : vector<1x16x128xi32>
    %12 = arith.select %11, %3, %9 : vector<1x16x128xi1>, vector<1x16x128xf32>
    %13 = arith.addf %0, %12 : vector<1x16x128xf32>
    %c1_i32 = arith.constant 1 : i32
    %14 = tpu.dynamic_rotate %0 by %c1_i32 dim 1 : vector<1x16x128xf32>, i32 -> vector<1x16x128xf32>
    %c1_i32_3 = arith.constant 1 : i32
    %15 = vector.broadcast %c1_i32_3 : i32 to vector<1x16x128xi32>
    %16 = arith.cmpi slt, %7, %15 : vector<1x16x128xi32>
    %17 = arith.select %16, %3, %14 : vector<1x16x128xi1>, vector<1x16x128xf32>
    %18 = arith.addf %8, %17 : vector<1x16x128xf32>
    %c15_i32 = arith.constant 15 : i32
    %19 = tpu.dynamic_rotate %0 by %c15_i32 dim 1 : vector<1x16x128xf32>, i32 -> vector<1x16x128xf32>
    %c15_i32_4 = arith.constant 15 : i32
    %20 = vector.broadcast %c15_i32_4 : i32 to vector<1x16x128xi32>
    %21 = arith.cmpi sge, %7, %20 : vector<1x16x128xi32>
    %22 = arith.select %21, %6, %19 : vector<1x16x128xi1>, vector<1x16x128xf32>
    %23 = arith.addf %13, %22 : vector<1x16x128xf32>
    %c14_i32 = arith.constant 14 : i32
    %24 = tpu.dynamic_rotate %0 by %c14_i32 dim 1 : vector<1x16x128xf32>, i32 -> vector<1x16x128xf32>
    %c14_i32_5 = arith.constant 14 : i32
    %25 = vector.broadcast %c14_i32_5 : i32 to vector<1x16x128xi32>
    %26 = arith.cmpi sge, %7, %25 : vector<1x16x128xi32>
    %27 = arith.select %26, %6, %24 : vector<1x16x128xi1>, vector<1x16x128xf32>
    %28 = arith.addf %18, %27 : vector<1x16x128xf32>
    %29 = arith.addf %23, %28 : vector<1x16x128xf32>
    %cst_6 = arith.constant 2.000000e-01 : f32
    %30 = vector.broadcast %cst_6 : f32 to vector<1x16x128xf32>
    %31 = arith.mulf %29, %30 : vector<1x16x128xf32>
    %c0_7 = arith.constant 0 : index
    %c0_8 = arith.constant 0 : index
    %c0_9 = arith.constant 0 : index
    %32 = vector.load %arg4[%c0_7, %c0_8, %c0_9] : memref<1x16x128xf32, #tpu.memory_space<vmem>>, vector<1x16x128xf32>
    tpu.vector_store %arg4[%c0_7, %c0_8, %c0_9], %31 {strides = array<i32>} : memref<1x16x128xf32, #tpu.memory_space<vmem>>, vector<1x16x128xf32>,
    %33 = arith.subf %0, %31 : vector<1x16x128xf32>
    %c0_10 = arith.constant 0 : index
    %c0_11 = arith.constant 0 : index
    %c0_12 = arith.constant 0 : index
    %34 = vector.load %arg3[%c0_10, %c0_11, %c0_12] : memref<1x16x128xf32, #tpu.memory_space<vmem>>, vector<1x16x128xf32>
    tpu.vector_store %arg3[%c0_10, %c0_11, %c0_12], %33 {strides = array<i32>} : memref<1x16x128xf32, #tpu.memory_space<vmem>>, vector<1x16x128xf32>,
    return
  }
  func.func @transform_0(%arg0: i32, %arg1: i32) -> (i32, i32, i32) {
    %c0_i32 = arith.constant 0 : i32
    %c0_i32_0 = arith.constant 0 : i32
    return %arg0, %c0_i32, %arg1 : i32, i32, i32
  }
  func.func @transform_1(%arg0: i32, %arg1: i32) -> (i32, i32, i32) {
    %c0_i32 = arith.constant 0 : i32
    %c0_i32_0 = arith.constant 0 : i32
    return %arg0, %c0_i32, %arg1 : i32, i32, i32
  }
  func.func @transform_2(%arg0: i32, %arg1: i32) -> (i32, i32, i32) {
    %c0_i32 = arith.constant 0 : i32
    %c0_i32_0 = arith.constant 0 : i32
    return %arg0, %c0_i32, %arg1 : i32, i32, i32
  }
}

</mosaic_0001>

<llo_original>
// kernel: tpu_custom_call.1
$region0: #{tpu_custom_call.1}
  #allocation0 [shape = 'u32[]', space=smem, size = 0x4, offset = 0x4, fixed_abs, tag = 'smem constant byte address 0x4 - core index']
  #allocation1 [shape = 'u32[144,128]{1,0:T(1,128)}', space=vmem, size = 0x12000, scoped, tag = 'internal scratch']
  %s0 = inlined_call_operand.hbm [shape: f32[2,16,128], index: 0, kind: input, shape index: {}]
  %s1 = inlined_call_operand.hbm [shape: f32[2,16,128], index: 1, kind: output, shape index: {0}]
  %s2 = inlined_call_operand.hbm [shape: f32[2,16,128], index: 2, kind: output, shape index: {1}]
  %3 = xla_tuple %s1, %s2
  %s4 = sld [smem:[#allocation0]]
  $region49: #{tpu_custom_call.1} parent=0
    _
  %s6 = ssub.s32 1, %s4
  %s7 = scalar_select 0, %s6, %s4
  $region1: #{tpu_custom_call.1} parent=0
    #allocation2 [shape = 'u8[16384]{0}', space=vmem, size = 0x4000, scoped, tag = 'input window, operand 0']
    #allocation3 [shape = 's32[2]{0}', space=sflag, size = 0x8, scoped, tag = 'scoped memory for tpu_custom_call.1']
    #allocation4 [shape = 's32[2]{0}', space=sflag, size = 0x8, scoped, tag = 'scoped memory for tpu_custom_call.1']
    #allocation5 [shape = 'u8[16384]{0}', space=vmem, size = 0x4000, scoped, tag = 'output window, operand 0']
    #allocation6 [shape = 'u8[16384]{0}', space=vmem, size = 0x4000, scoped, tag = 'output window, operand 1']
    #allocation7 [shape = 's32[2]{0}', space=sflag, size = 0x8, scoped, tag = 'scoped memory for tpu_custom_call.1']
    %8 = vsyncpa [#allocation3], 0
    %s9 = scalar_lea.sflag [#allocation3], 1
    %10 = vsyncpa %s9, 0
    %11 = vsyncpa [#allocation4], 0
    %s12 = scalar_lea.sflag [#allocation4], 1
    %13 = vsyncpa %s12, 0
    %14 = vsyncpa [#allocation7], 0
    %s15 = scalar_lea.sflag [#allocation7], 1
    %16 = vsyncpa %s15, 0
    loop: start=0, step=1, limit=4
    $region2: #{tpu_custom_call.1} parent=1 // loop_pre_header
      _
    $region3: #{tpu_custom_call.1} parent=1 // loop_header
      %s18 = sphi 0, %s22
      %p19 = scmp.ge.s32.totalorder %s18, 4
      %s25 = sphi 0, %s37
      %s26 = sphi 0, %s33
      %s27 = sphi 0, %s25
      %s28 = sphi 0, %s26
      %s29 = sphi 0, %s27
      %s30 = sphi 0, %s28
      %s42 = sphi 0, %s44
      %s45 = sphi 0, %s42
      %s46 = sphi 0, %s45
      %s62 = sphi 0, %s46
      %s70 = sphi 0, %s72
      %s73 = sphi 0, %s70
      %s74 = sphi 0, %s73
      %s90 = sphi 0, %s74
      %s98 = sphi 0, %s100
      %s101 = sphi 0, %s98
      %s102 = sphi 0, %s101
      %s118 = sphi 0, %s102
    $region4: #{tpu_custom_call.1} parent=1 // loop_header_branch
      %21 = sbr.rel (%p19) target = $region8
    $region5: #{tpu_custom_call.1} parent=1 // loop_body
      %s23 = ssub.s32 %s18, 1
      %s24 = ssub.s32 %s18, 2
      %s31 = sadd.s32 1, %s26
      %p32 = scmp.ge.s32.totalorder %s31, 1
      %s33 = scalar_select %p32, 0, %s31
      %s34 = sadd.s32 1, %s25
      %s35 = scalar_select %p32, %s34, %s25
      %p36 = scmp.ge.s32.totalorder %s35, 2
      %s37 = scalar_select %p36, 0, %s35
      %s38 = ssub.s32 %s25, %s37
      %s39 = ssub.s32 %s26, %s33
      %s40 = sor.u32 %s38, %s39
      %p41 = scmp.eq.s32.totalorder %s40, 0
      %s43 = sadd.s32 %s42, 1
      %s44 = scalar_select %p41, %s42, %s43
      %p47 = pneg %p41
      %p48 = scmp.eq.s32.totalorder %s18, 1
      %p49 = por %p47, %p48
      %p50 = scmp.ne.s32.totalorder %s42, %s45
      %p51 = scmp.eq.s32.totalorder %s18, 0
      %p52 = por %p50, %p51
      %p53 = scmp.ne.s32.totalorder %s42, %s45
      %p54 = scmp.eq.s32.totalorder %s23, 1
      %p55 = por %p53, %p54
      %p56 = scmp.ne.s32.totalorder %s45, %s46
      %p57 = scmp.eq.s32.totalorder %s23, 0
      %p58 = por %p56, %p57
      %p59 = scmp.ne.s32.totalorder %s45, %s46
      %p60 = scmp.eq.s32.totalorder %s24, 1
      %p61 = por %p59, %p60
      %p63 = scmp.ne.s32.totalorder %s46, %s62
      %p64 = scmp.eq.s32.totalorder %s24, 0
      %p65 = por %p63, %p64
      %s66 = ssub.s32 %s25, %s37
      %s67 = ssub.s32 %s26, %s33
      %s68 = sor.u32 %s66, %s67
      %p69 = scmp.eq.s32.totalorder %s68, 0
      %s71 = sadd.s32 %s70, 1
      %s72 = scalar_select %p69, %s70, %s71
      %p75 = pneg %p69
      %p76 = scmp.eq.s32.totalorder %s18, 1
      %p77 = por %p75, %p76
      %p78 = scmp.ne.s32.totalorder %s70, %s73
      %p79 = scmp.eq.s32.totalorder %s18, 0
      %p80 = por %p78, %p79
      %p81 = scmp.ne.s32.totalorder %s70, %s73
      %p82 = scmp.eq.s32.totalorder %s23, 1
      %p83 = por %p81, %p82
      %p84 = scmp.ne.s32.totalorder %s73, %s74
      %p85 = scmp.eq.s32.totalorder %s23, 0
      %p86 = por %p84, %p85
      %p87 = scmp.ne.s32.totalorder %s73, %s74
      %p88 = scmp.eq.s32.totalorder %s24, 1
      %p89 = por %p87, %p88
      %p91 = scmp.ne.s32.totalorder %s74, %s90
      %p92 = scmp.eq.s32.totalorder %s24, 0
      %p93 = por %p91, %p92
      %s94 = ssub.s32 %s25, %s37
      %s95 = ssub.s32 %s26, %s33
      %s96 = sor.u32 %s94, %s95
      %p97 = scmp.eq.s32.totalorder %s96, 0
      %s99 = sadd.s32 %s98, 1
      %s100 = scalar_select %p97, %s98, %s99
      %p103 = pneg %p97
      %p104 = scmp.eq.s32.totalorder %s18, 1
      %p105 = por %p103, %p104
      %p106 = scmp.ne.s32.totalorder %s98, %s101
      %p107 = scmp.eq.s32.totalorder %s18, 0
      %p108 = por %p106, %p107
      %p109 = scmp.ne.s32.totalorder %s98, %s101
      %p110 = scmp.eq.s32.totalorder %s23, 1
      %p111 = por %p109, %p110
      %p112 = scmp.ne.s32.totalorder %s101, %s102
      %p113 = scmp.eq.s32.totalorder %s23, 0
      %p114 = por %p112, %p113
      %p115 = scmp.ne.s32.totalorder %s101, %s102
      %p116 = scmp.eq.s32.totalorder %s24, 1
      %p117 = por %p115, %p116
      %p119 = scmp.ne.s32.totalorder %s102, %s118
      %p120 = scmp.eq.s32.totalorder %s24, 0
      %p121 = por %p119, %p120
      %p122 = scmp.le.s32.totalorder 1, %s18
      %p123 = scmp.lt.s32.totalorder %s18, 3
      %p124 = pnand %p122, %p123
      %p125 = pneg %p124
      // Predicated region
      $region9: #{tpu_custom_call.1} parent=5 // pred_check
        _
      $region10: #{tpu_custom_call.1} parent=5 // pred_check_branch
        %127 = sbr.rel (%p124) target = $region12
      $region11: #{tpu_custom_call.1} parent=5 // pred_region
        %s128 = ssub.s32 %s18, 1
      $region12: #{tpu_custom_call.1} parent=5 // pred_fallthru
        _
      %p129 = scmp.lt.s32.totalorder %s18, 2
      // Predicated region
      $region13: #{tpu_custom_call.1} parent=5 // pred_check
        %p130 = pneg %p129
      $region14: #{tpu_custom_call.1} parent=5 // pred_check_branch
        %132 = sbr.rel (%p130) target = $region16
      $region15: #{tpu_custom_call.1} parent=5 // pred_region
        // Predicated region
        $region17: #{tpu_custom_call.1} parent=15 // pred_check
          %p133 = pneg %p52
        $region18: #{tpu_custom_call.1} parent=15 // pred_check_branch
          %135 = sbr.rel (%p133) target = $region20
        $region19: #{tpu_custom_call.1} parent=15 // pred_region
          %s136 = sand.u32 %s42, 1
          %s137 = scalar_lea.sflag [#allocation3], %s136
          %s138 = sand.u32 %s42, 1
          %s139 = smul.addr %s138, 16
          %s140 = scalar_lea.vmem [#allocation2], %s139
          %s142 = ssub.s32 256, 256
          %143 = vsyncadd %s137, %s142
          %s144 = smul.addr %s25, 2
          %s145 = sadd.s32 %s26, %s144
          %s146 = smul.addr %s145, 128
          %s147 = scalar_lea.hbm %s0, %s146
          %s148 = sshll.u32 %s140, 4
          %s149 = int_to_ptr.vmem [resolvable:$true] %s148
          %154 = dma.hbm_to_vmem [thread:$0]  %s147, 256, %s149, %s137, 128, 128, 8
        $region20: #{tpu_custom_call.1} parent=15 // pred_fallthru
          _
      $region16: #{tpu_custom_call.1} parent=5 // pred_fallthru
        _
      %p155 = scmp.le.s32.totalorder 1, %s18
      %p156 = scmp.lt.s32.totalorder %s18, 3
      %p157 = pnand %p155, %p156
      %p158 = pneg %p157
      // Predicated region
      $region21: #{tpu_custom_call.1} parent=5 // pred_check
        _
      $region22: #{tpu_custom_call.1} parent=5 // pred_check_branch
        %160 = sbr.rel (%p157) target = $region24
      $region23: #{tpu_custom_call.1} parent=5 // pred_region
        %s161 = ssub.s32 %s18, 1
        %s162 = sand.u32 %s45, 1
        %s163 = scalar_lea.sflag [#allocation3], %s162
        %s164 = sand.u32 %s45, 1
        %s165 = smul.addr %s164, 16
        %s166 = scalar_lea.vmem [#allocation2], %s165
        // Predicated region
        $region25: #{tpu_custom_call.1} parent=23 // pred_check
          %p167 = pneg %p58
        $region26: #{tpu_custom_call.1} parent=23 // pred_check_branch
          %169 = sbr.rel (%p167) target = $region28
        $region27: #{tpu_custom_call.1} parent=23 // pred_region
          %170 = dma.done %s163, 256
        $region28: #{tpu_custom_call.1} parent=23 // pred_fallthru
          _
        %s171 = sand.u32 %s45, 1
        %s172 = scalar_lea.sflag [#allocation3], %s171
        %s173 = sand.u32 %s45, 1
        %s174 = smul.addr %s173, 16
        %s175 = scalar_lea.vmem [#allocation2], %s174
        %p176 = pneg %p58
        %p177 = pneg %p55
        %p178 = pneg %p86
        %p179 = pneg %p83
        %s180 = sand.u32 %s73, 1
        %s181 = scalar_lea.sflag [#allocation4], %s180
        %s182 = sand.u32 %s73, 1
        %s183 = smul.addr %s182, 16
        %s184 = scalar_lea.vmem [#allocation5], %s183
        %p185 = pneg %p114
        %p186 = pneg %p111
        %s187 = sand.u32 %s101, 1
        %s188 = scalar_lea.sflag [#allocation7], %s187
        %s189 = sand.u32 %s101, 1
        %s190 = smul.addr %s189, 16
        %s191 = scalar_lea.vmem [#allocation6], %s190
        %v192 = vld [vmem:[%s166] sm:$0xff]
        %v193 = vld [vmem:[%s166 + $0x8] sm:$0xff]
        %v194 = vlaneseq
        %v195 = vshrl.u32 %v194, 7
        %v196 = vsub.s32 0, %v195
        %v197 = vrot.slane %v192, %v196
        %v198 = vlaneseq
        %v199 = vshrl.u32 %v198, 7
        %v200 = vsub.s32 7, %v199
        %v201 = vrot.slane %v193, %v200
        %v202 = vlaneseq
        %v203 = vshrl.u32 %v202, 7
        %v204 = vadd.s32 %v203, 8
        %v205 = vrot.slane %v192, 6
        %v206 = vrot.slane %v193, 6
        %vm207 = vcmp.lt.s32.totalorder %v203, 2
        %v208 = vsel %vm207, %v205, %v206
        %v209 = vsel %vm207, %v206, %v205
        %vm210 = vcmp.lt.s32.totalorder %v204, 2
        %v211 = vsel %vm207, %v197, %v209
        %v212 = vsel %vm210, %v197, %v208
        %v213 = vadd.f32 %v192, %v211
        %v214 = vadd.f32 %v193, %v212
        %v215 = vrot.slane %v192, 7
        %v216 = vrot.slane %v193, 7
        %vm217 = vcmp.lt.s32.totalorder %v203, 1
        %v218 = vsel %vm217, %v215, %v216
        %v219 = vsel %vm217, %v216, %v215
        %vm220 = vcmp.lt.s32.totalorder %v204, 1
        %v221 = vsel %vm217, %v197, %v219
        %v222 = vsel %vm220, %v197, %v218
        %v223 = vadd.f32 %v221, 0.0
        %v224 = vadd.f32 %v222, 0.0
        %v225 = vrot.slane %v192, 1
        %v226 = vrot.slane %v193, 1
        %vm227 = vcmp.lt.s32.totalorder %v203, 7
        %v228 = vsel %vm227, %v225, %v226
        %v229 = vsel %vm227, %v226, %v225
        %vm230 = vcmp.ge.s32.totalorder %v203, 15
        %vm231 = vcmp.ge.s32.totalorder %v204, 15
        %v232 = vsel %vm230, %v201, %v228
        %v233 = vsel %vm231, %v201, %v229
        %v234 = vadd.f32 %v213, %v232
        %v235 = vadd.f32 %v214, %v233
        %v236 = vrot.slane %v192, 2
        %v237 = vrot.slane %v193, 2
        %vm238 = vcmp.lt.s32.totalorder %v203, 6
        %v239 = vsel %vm238, %v236, %v237
        %v240 = vsel %vm238, %v237, %v236
        %vm241 = vcmp.ge.s32.totalorder %v203, 14
        %vm242 = vcmp.ge.s32.totalorder %v204, 14
        %v243 = vsel %vm241, %v201, %v239
        %v244 = vsel %vm242, %v201, %v240
        %v245 = vadd.f32 %v223, %v243
        %v246 = vadd.f32 %v224, %v244
        %v247 = vadd.f32 %v234, %v245
        %v248 = vadd.f32 %v235, %v246
        %v249 = vmul.f32 %v247, 0.2
        %v250 = vmul.f32 %v248, 0.2
        %251 = vst [vmem:[%s191] sm:$0xff] %v249
        %252 = vst [vmem:[%s191 + $0x8] sm:$0xff] %v250
        %v253 = vsub.f32 %v192, %v249
        %v254 = vsub.f32 %v193, %v250
        %255 = vst [vmem:[%s184] sm:$0xff] %v253
        %256 = vst [vmem:[%s184 + $0x8] sm:$0xff] %v254
        %s257 = sand.u32 %s73, 1
        %s258 = scalar_lea.sflag [#allocation4], %s257
        %s259 = sand.u32 %s73, 1
        %s260 = smul.addr %s259, 16
        %s261 = scalar_lea.vmem [#allocation5], %s260
        %s262 = sand.u32 %s101, 1
        %s263 = scalar_lea.sflag [#allocation7], %s262
        %s264 = sand.u32 %s101, 1
        %s265 = smul.addr %s264, 16
        %s266 = scalar_lea.vmem [#allocation6], %s265
        // Predicated region
        $region29: #{tpu_custom_call.1} parent=23 // pred_check
          %p267 = pneg %p83
        $region30: #{tpu_custom_call.1} parent=23 // pred_check_branch
          %269 = sbr.rel (%p267) target = $region32
        $region31: #{tpu_custom_call.1} parent=23 // pred_region
          %s271 = ssub.s32 256, 256
          %272 = vsyncadd %s258, %s271
          %s273 = smul.addr %s27, 2
          %s274 = sadd.s32 %s28, %s273
          %s275 = smul.addr %s274, 128
          %s276 = scalar_lea.hbm %s1, %s275
          %s277 = sshll.u32 %s261, 4
          %s278 = int_to_ptr.vmem [resolvable:$true] %s277
          %283 = dma.vmem_to_hbm [thread:$0]  %s278, 256, %s276, %s258, 128, 128, 8
        $region32: #{tpu_custom_call.1} parent=23 // pred_fallthru
          _
        // Predicated region
        $region33: #{tpu_custom_call.1} parent=23 // pred_check
          %p284 = pneg %p111
        $region34: #{tpu_custom_call.1} parent=23 // pred_check_branch
          %286 = sbr.rel (%p284) target = $region36
        $region35: #{tpu_custom_call.1} parent=23 // pred_region
          %s288 = ssub.s32 256, 256
          %289 = vsyncadd %s263, %s288
          %s290 = smul.addr %s27, 2
          %s291 = sadd.s32 %s28, %s290
          %s292 = smul.addr %s291, 128
          %s293 = scalar_lea.hbm %s2, %s292
          %s294 = sshll.u32 %s266, 4
          %s295 = int_to_ptr.vmem [resolvable:$true] %s294
          %300 = dma.vmem_to_hbm [thread:$0]  %s295, 256, %s293, %s263, 128, 128, 8
        $region36: #{tpu_custom_call.1} parent=23 // pred_fallthru
          _
      $region24: #{tpu_custom_call.1} parent=5 // pred_fallthru
        _
      %p301 = scmp.le.s32.totalorder 2, %s18
      // Predicated region
      $region37: #{tpu_custom_call.1} parent=5 // pred_check
        %p302 = pneg %p301
      $region38: #{tpu_custom_call.1} parent=5 // pred_check_branch
        %304 = sbr.rel (%p302) target = $region40
      $region39: #{tpu_custom_call.1} parent=5 // pred_region
        %s305 = ssub.s32 %s18, 2
        // Predicated region
        $region41: #{tpu_custom_call.1} parent=39 // pred_check
          %p306 = pneg %p89
        $region42: #{tpu_custom_call.1} parent=39 // pred_check_branch
          %308 = sbr.rel (%p306) target = $region44
        $region43: #{tpu_custom_call.1} parent=39 // pred_region
          %s309 = sand.u32 %s74, 1
          %s310 = scalar_lea.sflag [#allocation4], %s309
          %s311 = sand.u32 %s74, 1
          %s312 = smul.addr %s311, 16
          %s313 = scalar_lea.vmem [#allocation5], %s312
          %314 = dma.done %s310, 256
        $region44: #{tpu_custom_call.1} parent=39 // pred_fallthru
          _
        // Predicated region
        $region45: #{tpu_custom_call.1} parent=39 // pred_check
          %p315 = pneg %p117
        $region46: #{tpu_custom_call.1} parent=39 // pred_check_branch
          %317 = sbr.rel (%p315) target = $region48
        $region47: #{tpu_custom_call.1} parent=39 // pred_region
          %s318 = sand.u32 %s102, 1
          %s319 = scalar_lea.sflag [#allocation7], %s318
          %s320 = sand.u32 %s102, 1
          %s321 = smul.addr %s320, 16
          %s322 = scalar_lea.vmem [#allocation6], %s321
          %323 = dma.done %s319, 256
        $region48: #{tpu_custom_call.1} parent=39 // pred_fallthru
          _
      $region40: #{tpu_custom_call.1} parent=5 // pred_fallthru
        _
    $region6: #{tpu_custom_call.1} parent=1 // loop_footer
      %s22 = sadd.s32 1, %s18
    $region7: #{tpu_custom_call.1} parent=1 // loop_footer_branch
      %17 = sbr.rel target = $region3
    $region8: #{tpu_custom_call.1} parent=1 // loop_exit
      _
    %324 = vsyncpa [#allocation3], 1
    %s325 = scalar_lea.sflag [#allocation3], 1
    %326 = vsyncpa %s325, 1
    %327 = vsyncpa [#allocation4], 1
    %s328 = scalar_lea.sflag [#allocation4], 1
    %329 = vsyncpa %s328, 1
    %330 = vsyncpa [#allocation7], 1
    %s331 = scalar_lea.sflag [#allocation7], 1
    %332 = vsyncpa %s331, 1

</llo_original>
